<compile_context>
chip_gen: v7x
topology: tpu7x:2x2x1
jax: 0.10.0
libtpu: 0.0.40
codegen_flags: <defaults>
</compile_context>

<pallas_src>
from functools import partial

import jax
import jax.numpy as jnp
from jax.experimental import pallas as pl
from jax.experimental.pallas import tpu as pltpu


# --------------------------------------------------------------------------- #
# Kernel
# --------------------------------------------------------------------------- #
def _make_kernel(approximate_gelu: bool):
    def kernel(x_ref, w1_ref, w2_ref, params_ref, o_ref):
        # Packed per-feature parameters, kept in f32 for the elementwise path.
        params = params_ref[...]                     # (4, P) f32
        b1 = params[0:1, :]
        b2 = params[1:2, :]
        gamma = params[2:3, :]
        beta = params[3:4, :]

        # projection: Linear(E -> P). bf16 (or f32) operands, f32 accumulation.
        projected = jnp.dot(x_ref[...], w1_ref[...],
                            preferred_element_type=jnp.float32) + b1

        if approximate_gelu:
            # tanh GELU -> transcendental runs on the EUP (frees VALU slots).
            c = 0.7978845608028654  # sqrt(2/pi)
            h = 0.5 * projected * (
                1.0 + jnp.tanh(c * (projected + 0.044715 * projected * projected * projected)))
        else:
            # Exact erf GELU (PyTorch nn.GELU() default).
            h = 0.5 * projected * (1.0 + jax.lax.erf(projected * (2.0 ** -0.5)))

        # fc: Linear(P -> P). Cast activations to the weight dtype (no-op for
        # f32, bf16 MXU fast path otherwise), accumulate in f32.
        h = jnp.dot(h.astype(w2_ref.dtype), w2_ref[...],
                    preferred_element_type=jnp.float32) + b2

        # Dropout in eval mode is identity; residual add (pre-GELU projection).
        # TODO(synk): training-mode dropout (RNG mask) is not modeled; this is
        # the eval-mode (identity) forward pass only.
        h = h + projected

        # LayerNorm over the last dim (biased variance, eps=1e-5, affine).
        mean = jnp.mean(h, axis=-1, keepdims=True)
        centered = h - mean
        var = jnp.mean(centered * centered, axis=-1, keepdims=True)
        out = centered * jax.lax.rsqrt(var + 1e-5) * gamma + beta

        o_ref[...] = out.astype(o_ref.dtype)

    return kernel


# --------------------------------------------------------------------------- #
# Host-side helpers
# --------------------------------------------------------------------------- #
def _round_up(n, m):
    return ((n + m - 1) // m) * m


def _choose_row_tile(n, requested=None, max_tile=512, align=128):
    """MXU/layout-aligned row tile, preferring >=2 grid steps (v7x dual-TC)."""
    if requested is not None:
        return max(align, _round_up(requested, align))
    n_pad = _round_up(max(n, 1), align)
    tile = min(max_tile, n_pad)
    # If one tile would swallow the whole (padded) batch but the batch spans at
    # least two aligned tiles, split it so the grid has >= 2 steps: this shards
    # across v7x's two TensorCores and restores DMA/compute overlap.
    if tile == n_pad and n_pad >= 2 * align:
        tile = max(align, (n_pad // 2) // align * align)
    return tile


def _vmem_limit_bytes(row_tile, E, P, mm_itemsize, out_itemsize):
    x_tiles = 2 * row_tile * E * mm_itemsize          # double-buffered input
    out_tiles = 2 * row_tile * P * out_itemsize       # double-buffered output
    weights = 2 * (E * P + P * P) * mm_itemsize       # resident W1/W2 (2 bufs)
    params = 2 * 4 * P * 4                            # packed b1/b2/gamma/beta
    need = x_tiles + out_tiles + weights + params
    # Generous headroom, but stay within v7x's 64 MiB physical VMEM per core.
    return int(min(max(2 * need, 32 << 20), 64 << 20))


def _build_pallas_call(n_padded, E, P, row_tile, out_dtype, mm_itemsize,
                       approximate_gelu):
    grid = (n_padded // row_tile,)
    vmem_limit = _vmem_limit_bytes(row_tile, E, P, mm_itemsize,
                                   jnp.dtype(out_dtype).itemsize)
    return pl.pallas_call(
        _make_kernel(approximate_gelu),
        out_shape=jax.ShapeDtypeStruct((n_padded, P), out_dtype),
        grid_spec=pltpu.PrefetchScalarGridSpec(
            num_scalar_prefetch=0,
            grid=grid,
            in_specs=[
                pl.BlockSpec((row_tile, E), lambda i: (i, 0)),   # x tile
                pl.BlockSpec((E, P), lambda i: (0, 0)),          # W1 (resident)
                pl.BlockSpec((P, P), lambda i: (0, 0)),          # W2 (resident)
                pl.BlockSpec((4, P), lambda i: (0, 0)),          # b1/b2/gamma/beta
            ],
            out_specs=pl.BlockSpec((row_tile, P), lambda i: (i, 0)),
        ),
        compiler_params=pltpu.CompilerParams(
            dimension_semantics=("parallel",),
            vmem_limit_bytes=vmem_limit),
    )


@partial(jax.jit, static_argnames=("matmul_dtype", "approximate_gelu", "row_tile"))
def projection_head(x, w1, b1, w2, b2, gamma, beta, *,
                    matmul_dtype=jnp.bfloat16, approximate_gelu=False,
                    row_tile=None):
    """Fused BLEEP ProjectionHead forward (eval mode).

    x: [N, E].  w1: [E, P], w2: [P, P], b1/b2/gamma/beta: [P] or [1, P].

    matmul_dtype:     dtype of the MXU operands (default bf16 on all TPU gens;
                      accumulation and elementwise math stay f32). None keeps
                      full-f32 matmul operands.
    approximate_gelu: use tanh GELU (EUP) instead of PyTorch's exact erf GELU.
    row_tile:         optional override; otherwise auto-chosen (128-aligned,
                      <=512, >=2 grid steps when the batch allows it).
    """
    N, E = x.shape
    P = w1.shape[1]
    out_dtype = x.dtype

    tile = _choose_row_tile(N, row_tile)
    n_padded = _round_up(N, tile)

    mm_dtype = x.dtype if matmul_dtype is None else matmul_dtype
    x_in = x.astype(mm_dtype)
    if n_padded != N:
        # Padded rows are computed harmlessly and sliced off after the call.
        x_in = jnp.pad(x_in, ((0, n_padded - N), (0, 0)))
    w1_in = w1.astype(mm_dtype)
    w2_in = w2.astype(mm_dtype)

    # Pack the four per-feature parameter vectors into one pipelined operand.
    params = jnp.concatenate(
        [jnp.reshape(p, (1, P)).astype(jnp.float32)
         for p in (b1, b2, gamma, beta)], axis=0)

    call = _build_pallas_call(n_padded, E, P, tile, out_dtype,
                              jnp.dtype(mm_dtype).itemsize, approximate_gelu)
    out = call(x_in, w1_in, w2_in, params)
    return out[:N]


# --------------------------------------------------------------------------- #
# Pure-JAX reference
# --------------------------------------------------------------------------- #
def projection_head_ref(x, w1, b1, w2, b2, gamma, beta, approximate=False):
    b1 = jnp.reshape(b1, (1, -1))
    b2 = jnp.reshape(b2, (1, -1))
    gamma = jnp.reshape(gamma, (1, -1))
    beta = jnp.reshape(beta, (1, -1))
    projected = x @ w1 + b1
    h = jax.nn.gelu(projected, approximate=approximate)
    h = h @ w2 + b2
    h = h + projected
    mean = jnp.mean(h, axis=-1, keepdims=True)
    var = jnp.mean((h - mean) ** 2, axis=-1, keepdims=True)
    return (h - mean) * jax.lax.rsqrt(var + 1e-5) * gamma + beta


if __name__ == "__main__":
    # Small, module-consistent shapes: batch of token embeddings.
    # N deliberately NOT a multiple of the row tile to exercise padding; the
    # auto tile chooser gives row_tile=128 / n_padded=256 -> 2 grid steps.
    N = 200          # batch (rows)
    E = 32           # embedding_dim
    P = 256          # projection_dim (module default)

    key = jax.random.PRNGKey(0)
    kx, kw1, kb1, kw2, kb2 = jax.random.split(key, 5)

    x = jax.random.normal(kx, (N, E), dtype=jnp.float32)
    # Deterministic synthetic weights (stored as (in, out) for x @ W).
    w1 = jax.random.normal(kw1, (E, P), dtype=jnp.float32) * (1.0 / jnp.sqrt(E))
    b1 = jax.random.normal(kb1, (P,), dtype=jnp.float32) * 0.01
    w2 = jax.random.normal(kw2, (P, P), dtype=jnp.float32) * (1.0 / jnp.sqrt(P))
    b2 = jax.random.normal(kb2, (P,), dtype=jnp.float32) * 0.01
    gamma = jnp.ones((P,), dtype=jnp.float32)     # LayerNorm default init
    beta = jnp.zeros((P,), dtype=jnp.float32)

    ref_exact = projection_head_ref(x, w1, b1, w2, b2, gamma, beta, approximate=False)

    # Full-f32 matmul operands: tight tolerance vs reference.
    out_f32 = projection_head(x, w1, b1, w2, b2, gamma, beta, matmul_dtype=None)
    out_f32 = jax.block_until_ready(out_f32)
    assert out_f32.shape == (N, P)
    assert jnp.allclose(out_f32, ref_exact, atol=1e-3, rtol=1e-3), "f32 mismatch vs reference"

    # Default path: bf16 MXU operands on all generations, f32 accumulation and
    # f32 GELU/LayerNorm. Input/weight bf16 rounding bounds the error (~1e-2).
    out_bf16 = projection_head(x, w1, b1, w2, b2, gamma, beta)
    out_bf16 = jax.block_until_ready(out_bf16)
    assert out_bf16.shape == (N, P)
    assert jnp.allclose(out_bf16, ref_exact, atol=1e-1, rtol=1e-2), "bf16 mismatch vs reference"

    # Optional approximate (tanh / EUP) GELU, checked against a tanh-GELU reference.
    ref_tanh = projection_head_ref(x, w1, b1, w2, b2, gamma, beta, approximate=True)
    out_tanh = projection_head(x, w1, b1, w2, b2, gamma, beta,
                               matmul_dtype=None, approximate_gelu=True)
    out_tanh = jax.block_until_ready(out_tanh)
    assert jnp.allclose(out_tanh, ref_tanh, atol=2e-3, rtol=2e-3), "tanh-GELU mismatch"

    print("KERNEL_OK")
</pallas_src>

<mosaic_0001>
module attributes {stable_mosaic.version = 11 : i64} {
  func.func @kernel(%arg0: i32, %arg1: memref<128x32xf32, #tpu.memory_space<vmem>>, %arg2: memref<32x256xf32, #tpu.memory_space<vmem>>, %arg3: memref<256x256xf32, #tpu.memory_space<vmem>>, %arg4: memref<4x256xf32, #tpu.memory_space<vmem>>, %arg5: memref<128x256xf32, #tpu.memory_space<vmem>>) attributes {dimension_semantics = [#tpu.dimension_semantics<parallel>], iteration_bounds = array<i64: 2>, scalar_prefetch = 0 : i64, scratch_operands = 0 : i64, tpu.core_type = #tpu.core_type<tc>, window_params = [{transform_indices = @transform_0, window_bounds = array<i64: 128, 32>}, {pipeline_mode = #tpu.pipeline_mode<synchronous>, transform_indices = @transform_1, window_bounds = array<i64: 32, 256>}, {pipeline_mode = #tpu.pipeline_mode<synchronous>, transform_indices = @transform_2, window_bounds = array<i64: 256, 256>}, {pipeline_mode = #tpu.pipeline_mode<synchronous>, transform_indices = @transform_3, window_bounds = array<i64: 4, 256>}, {transform_indices = @transform_4, window_bounds = array<i64: 128, 256>}]} {
    %c0 = arith.constant 0 : index
    %c0_0 = arith.constant 0 : index
    %0 = vector.load %arg4[%c0, %c0_0] : memref<4x256xf32, #tpu.memory_space<vmem>>, vector<4x256xf32>
    %1 = vector.extract_strided_slice %0 {offsets = [0, 0], sizes = [1, 256], strides = [1, 1]} : vector<4x256xf32> to vector<1x256xf32>
    %2 = vector.extract_strided_slice %0 {offsets = [1, 0], sizes = [1, 256], strides = [1, 1]} : vector<4x256xf32> to vector<1x256xf32>
    %3 = vector.extract_strided_slice %0 {offsets = [2, 0], sizes = [1, 256], strides = [1, 1]} : vector<4x256xf32> to vector<1x256xf32>
    %4 = vector.extract_strided_slice %0 {offsets = [3, 0], sizes = [1, 256], strides = [1, 1]} : vector<4x256xf32> to vector<1x256xf32>
    %c0_1 = arith.constant 0 : index
    %c0_2 = arith.constant 0 : index
    %5 = vector.load %arg1[%c0_1, %c0_2] : memref<128x32xf32, #tpu.memory_space<vmem>>, vector<128x32xf32>
    %c0_3 = arith.constant 0 : index
    %c0_4 = arith.constant 0 : index
    %6 = vector.load %arg2[%c0_3, %c0_4] : memref<32x256xf32, #tpu.memory_space<vmem>>, vector<32x256xf32>
    %cst = arith.constant dense<0.000000e+00> : vector<128x256xf32>
    %7 = tpu.matmul %5, %6, %cst {dimension_numbers = #tpu.dot_dimension_numbers<[1], [0], [0], [1], [0, 0, 1, 1], [], []>} : vector<128x32xf32>, vector<32x256xf32>, vector<128x256xf32> -> vector<128x256xf32>
    %8 = vector.broadcast %1 : vector<1x256xf32> to vector<128x256xf32>
    %9 = arith.addf %7, %8 : vector<128x256xf32>
    %cst_5 = arith.constant 5.000000e-01 : f32
    %10 = vector.broadcast %cst_5 : f32 to vector<128x256xf32>
    %11 = arith.mulf %10, %9 : vector<128x256xf32>
    %cst_6 = arith.constant 0.707106769 : f32
    %12 = vector.broadcast %cst_6 : f32 to vector<128x256xf32>
    %13 = arith.mulf %9, %12 : vector<128x256xf32>
    %14 = math.erf %13 : vector<128x256xf32>
    %cst_7 = arith.constant 1.000000e+00 : f32
    %15 = vector.broadcast %cst_7 : f32 to vector<128x256xf32>
    %16 = arith.addf %15, %14 : vector<128x256xf32>
    %17 = arith.mulf %11, %16 : vector<128x256xf32>
    %c0_8 = arith.constant 0 : index
    %c0_9 = arith.constant 0 : index
    %18 = vector.load %arg3[%c0_8, %c0_9] : memref<256x256xf32, #tpu.memory_space<vmem>>, vector<256x256xf32>
    %cst_10 = arith.constant dense<0.000000e+00> : vector<128x256xf32>
    %19 = tpu.matmul %17, %18, %cst_10 {dimension_numbers = #tpu.dot_dimension_numbers<[1], [0], [0], [1], [0, 0, 1, 1], [], []>} : vector<128x256xf32>, vector<256x256xf32>, vector<128x256xf32> -> vector<128x256xf32>
    %20 = vector.broadcast %2 : vector<1x256xf32> to vector<128x256xf32>
    %21 = arith.addf %19, %20 : vector<128x256xf32>
    %22 = arith.addf %21, %9 : vector<128x256xf32>
    %cst_11 = arith.constant dense<0.000000e+00> : vector<128xf32>
    %23 = vector.multi_reduction <add>, %22, %cst_11 [1] : vector<128x256xf32> to vector<128xf32>
    %24 = vector.shape_cast %23 : vector<128xf32> to vector<128x1xf32>
    %cst_12 = arith.constant 2.560000e+02 : f32
    %25 = vector.broadcast %cst_12 : f32 to vector<128x1xf32>
    %26 = arith.divf %24, %25 : vector<128x1xf32>
    %27 = vector.broadcast %26 : vector<128x1xf32> to vector<128x256xf32>
    %28 = arith.subf %22, %27 : vector<128x256xf32>
    %29 = arith.mulf %28, %28 : vector<128x256xf32>
    %cst_13 = arith.constant dense<0.000000e+00> : vector<128xf32>
    %30 = vector.multi_reduction <add>, %29, %cst_13 [1] : vector<128x256xf32> to vector<128xf32>
    %31 = vector.shape_cast %30 : vector<128xf32> to vector<128x1xf32>
    %cst_14 = arith.constant 2.560000e+02 : f32
    %32 = vector.broadcast %cst_14 : f32 to vector<128x1xf32>
    %33 = arith.divf %31, %32 : vector<128x1xf32>
    %cst_15 = arith.constant 9.99999974E-6 : f32
    %34 = vector.broadcast %cst_15 : f32 to vector<128x1xf32>
    %35 = arith.addf %33, %34 : vector<128x1xf32>
    %36 = math.rsqrt %35 : vector<128x1xf32>
    %37 = vector.broadcast %36 : vector<128x1xf32> to vector<128x256xf32>
    %38 = arith.mulf %28, %37 : vector<128x256xf32>
    %39 = vector.broadcast %3 : vector<1x256xf32> to vector<128x256xf32>
    %40 = arith.mulf %38, %39 : vector<128x256xf32>
    %41 = vector.broadcast %4 : vector<1x256xf32> to vector<128x256xf32>
    %42 = arith.addf %40, %41 : vector<128x256xf32>
    %c0_16 = arith.constant 0 : index
    %c0_17 = arith.constant 0 : index
    %43 = vector.load %arg5[%c0_16, %c0_17] : memref<128x256xf32, #tpu.memory_space<vmem>>, vector<128x256xf32>
    tpu.vector_store %arg5[%c0_16, %c0_17], %42 {strides = array<i32>} : memref<128x256xf32, #tpu.memory_space<vmem>>, vector<128x256xf32>,
    return
  }
  func.func @transform_0(%arg0: i32) -> (i32, i32) {
    %c0_i32 = arith.constant 0 : i32
    %c0_i32_0 = arith.constant 0 : i32
    return %arg0, %c0_i32 : i32, i32
  }
  func.func @transform_1(%arg0: i32) -> (i32, i32) {
    %c0_i32 = arith.constant 0 : i32
    %c0_i32_0 = arith.constant 0 : i32
    %c0_i32_1 = arith.constant 0 : i32
    return %c0_i32, %c0_i32_0 : i32, i32
  }
  func.func @transform_2(%arg0: i32) -> (i32, i32) {
    %c0_i32 = arith.constant 0 : i32
    %c0_i32_0 = arith.constant 0 : i32
    %c0_i32_1 = arith.constant 0 : i32
    return %c0_i32, %c0_i32_0 : i32, i32
  }
  func.func @transform_3(%arg0: i32) -> (i32, i32) {
    %c0_i32 = arith.constant 0 : i32
    %c0_i32_0 = arith.constant 0 : i32
    %c0_i32_1 = arith.constant 0 : i32
    return %c0_i32, %c0_i32_0 : i32, i32
  }
  func.func @transform_4(%arg0: i32) -> (i32, i32) {
    %c0_i32 = arith.constant 0 : i32
    %c0_i32_0 = arith.constant 0 : i32
    return %arg0, %c0_i32 : i32, i32
  }
}

</mosaic_0001>

<llo_original>
// kernel: projection_head.1
$region0: #{projection_head.1}
  #allocation0 [shape = 'u32[]', space=smem, size = 0x4, offset = 0x4, fixed_abs, tag = 'smem constant byte address 0x4 - core index']
  #allocation1 [shape = 'u32[144,128]{1,0:T(1,128)}', space=vmem, size = 0x12000, scoped, tag = 'internal scratch']
  %s0 = inlined_call_operand.vmem [shape: f32[256,32], index: 0, kind: input, shape index: {}]
  %s1 = inlined_call_operand.vmem [shape: f32[32,256], index: 1, kind: input, shape index: {}]
  %s2 = inlined_call_operand.vmem [shape: f32[256,256], index: 2, kind: input, shape index: {}]
  %s3 = inlined_call_operand.vmem [shape: f32[4,256], index: 3, kind: input, shape index: {}]
  %s4 = inlined_call_operand.vmem [shape: f32[256,256], index: 4, kind: output, shape index: {}]
  %s5 = sld [smem:[#allocation0]]
  $region49: #{projection_head.1} parent=0
    _
  %s7 = ssub.s32 1, %s5
  %s8 = scalar_select 0, %s7, %s5
  loop: start=0, step=1, limit=4
  $region2: #{projection_head.1} parent=0 // loop_pre_header
    _
  $region3: #{projection_head.1} parent=0 // loop_header
    %s10 = sphi 0, %s14
    %p11 = scmp.ge.s32.totalorder %s10, 4
    %s20 = sphi 0, %s22
    %s23 = sphi 0, %s20
    %s24 = sphi 0, %s23
    %s40 = sphi 0, %s24
    %s44 = sphi 0, %s44
    %s46 = sphi 0, %s44
    %s47 = sphi 0, %s46
    %s61 = sphi 0, %s47
    %s65 = sphi 0, %s65
    %s67 = sphi 0, %s65
    %s68 = sphi 0, %s67
    %s82 = sphi 0, %s68
    %s86 = sphi 0, %s86
    %s88 = sphi 0, %s86
    %s89 = sphi 0, %s88
    %s103 = sphi 0, %s89
    %s109 = sphi 0, %s111
    %s112 = sphi 0, %s109
    %s113 = sphi 0, %s112
    %s129 = sphi 0, %s113
  $region4: #{projection_head.1} parent=0 // loop_header_branch
    %13 = sbr.rel (%p11) target = $region8
  $region5: #{projection_head.1} parent=0 // loop_body
    %s15 = ssub.s32 %s10, 1
    %s16 = ssub.s32 %s10, 2
    %s17 = sadd.s32 %s10, 1
    %s18 = ssub.s32 %s10, %s17
    %p19 = scmp.eq.s32.totalorder %s18, 0
    %s21 = sadd.s32 %s20, 1
    %s22 = scalar_select %p19, %s20, %s21
    %p25 = pneg %p19
    %p26 = scmp.eq.s32.totalorder %s10, 1
    %p27 = por %p25, %p26
    %p28 = scmp.ne.s32.totalorder %s20, %s23
    %p29 = scmp.eq.s32.totalorder %s10, 0
    %p30 = por %p28, %p29
    %p31 = scmp.ne.s32.totalorder %s20, %s23
    %p32 = scmp.eq.s32.totalorder %s15, 1
    %p33 = por %p31, %p32
    %p34 = scmp.ne.s32.totalorder %s23, %s24
    %p35 = scmp.eq.s32.totalorder %s15, 0
    %p36 = por %p34, %p35
    %p37 = scmp.ne.s32.totalorder %s23, %s24
    %p38 = scmp.eq.s32.totalorder %s16, 1
    %p39 = por %p37, %p38
    %p41 = scmp.ne.s32.totalorder %s24, %s40
    %p42 = scmp.eq.s32.totalorder %s16, 0
    %p43 = por %p41, %p42
    %s45 = sadd.s32 %s44, 1
    %p48 = scmp.eq.s32.totalorder %s10, 1
    %p49 = scmp.ne.s32.totalorder %s44, %s46
    %p50 = scmp.eq.s32.totalorder %s10, 0
    %p51 = por %p49, %p50
    %p52 = scmp.ne.s32.totalorder %s44, %s46
    %p53 = scmp.eq.s32.totalorder %s15, 1
    %p54 = por %p52, %p53
    %p55 = scmp.ne.s32.totalorder %s46, %s47
    %p56 = scmp.eq.s32.totalorder %s15, 0
    %p57 = por %p55, %p56
    %p58 = scmp.ne.s32.totalorder %s46, %s47
    %p59 = scmp.eq.s32.totalorder %s16, 1
    %p60 = por %p58, %p59
    %p62 = scmp.ne.s32.totalorder %s47, %s61
    %p63 = scmp.eq.s32.totalorder %s16, 0
    %p64 = por %p62, %p63
    %s66 = sadd.s32 %s65, 1
    %p69 = scmp.eq.s32.totalorder %s10, 1
    %p70 = scmp.ne.s32.totalorder %s65, %s67
    %p71 = scmp.eq.s32.totalorder %s10, 0
    %p72 = por %p70, %p71
    %p73 = scmp.ne.s32.totalorder %s65, %s67
    %p74 = scmp.eq.s32.totalorder %s15, 1
    %p75 = por %p73, %p74
    %p76 = scmp.ne.s32.totalorder %s67, %s68
    %p77 = scmp.eq.s32.totalorder %s15, 0
    %p78 = por %p76, %p77
    %p79 = scmp.ne.s32.totalorder %s67, %s68
    %p80 = scmp.eq.s32.totalorder %s16, 1
    %p81 = por %p79, %p80
    %p83 = scmp.ne.s32.totalorder %s68, %s82
    %p84 = scmp.eq.s32.totalorder %s16, 0
    %p85 = por %p83, %p84
    %s87 = sadd.s32 %s86, 1
    %p90 = scmp.eq.s32.totalorder %s10, 1
    %p91 = scmp.ne.s32.totalorder %s86, %s88
    %p92 = scmp.eq.s32.totalorder %s10, 0
    %p93 = por %p91, %p92
    %p94 = scmp.ne.s32.totalorder %s86, %s88
    %p95 = scmp.eq.s32.totalorder %s15, 1
    %p96 = por %p94, %p95
    %p97 = scmp.ne.s32.totalorder %s88, %s89
    %p98 = scmp.eq.s32.totalorder %s15, 0
    %p99 = por %p97, %p98
    %p100 = scmp.ne.s32.totalorder %s88, %s89
    %p101 = scmp.eq.s32.totalorder %s16, 1
    %p102 = por %p100, %p101
    %p104 = scmp.ne.s32.totalorder %s89, %s103
    %p105 = scmp.eq.s32.totalorder %s16, 0
    %p106 = por %p104, %p105
    %s107 = ssub.s32 %s10, %s17
    %p108 = scmp.eq.s32.totalorder %s107, 0
    %s110 = sadd.s32 %s109, 1
    %s111 = scalar_select %p108, %s109, %s110
    %p114 = pneg %p108
    %p115 = scmp.eq.s32.totalorder %s10, 1
    %p116 = por %p114, %p115
    %p117 = scmp.ne.s32.totalorder %s109, %s112
    %p118 = scmp.eq.s32.totalorder %s10, 0
    %p119 = por %p117, %p118
    %p120 = scmp.ne.s32.totalorder %s109, %s112
    %p121 = scmp.eq.s32.totalorder %s15, 1
    %p122 = por %p120, %p121
    %p123 = scmp.ne.s32.totalorder %s112, %s113
    %p124 = scmp.eq.s32.totalorder %s15, 0
    %p125 = por %p123, %p124
    %p126 = scmp.ne.s32.totalorder %s112, %s113
    %p127 = scmp.eq.s32.totalorder %s16, 1
    %p128 = por %p126, %p127
    %p130 = scmp.ne.s32.totalorder %s113, %s129
    %p131 = scmp.eq.s32.totalorder %s16, 0
    %p132 = por %p130, %p131
    %p133 = scmp.le.s32.totalorder 1, %s10
    %p134 = scmp.lt.s32.totalorder %s10, 3
    %p135 = pnand %p133, %p134
    %p136 = pneg %p135
    // Predicated region
    $region9: #{projection_head.1} parent=5 // pred_check
      _
    $region10: #{projection_head.1} parent=5 // pred_check_branch
      %138 = sbr.rel (%p135) target = $region12
    $region11: #{projection_head.1} parent=5 // pred_region
      %s139 = ssub.s32 %s10, 1
      // Predicated region
      $region13: #{projection_head.1} parent=11 // pred_check
        %p140 = pneg %p57
      $region14: #{projection_head.1} parent=11 // pred_check_branch
        %142 = sbr.rel (%p140) target = $region16
      $region15: #{projection_head.1} parent=11 // pred_region
        _
      $region16: #{projection_head.1} parent=11 // pred_fallthru
        _
      // Predicated region
      $region17: #{projection_head.1} parent=11 // pred_check
        %p143 = pneg %p78
      $region18: #{projection_head.1} parent=11 // pred_check_branch
        %145 = sbr.rel (%p143) target = $region20
      $region19: #{projection_head.1} parent=11 // pred_region
        _
      $region20: #{projection_head.1} parent=11 // pred_fallthru
        _
      // Predicated region
      $region21: #{projection_head.1} parent=11 // pred_check
        %p146 = pneg %p99
      $region22: #{projection_head.1} parent=11 // pred_check_branch
        %148 = sbr.rel (%p146) target = $region24
      $region23: #{projection_head.1} parent=11 // pred_region
        _
      $region24: #{projection_head.1} parent=11 // pred_fallthru
        _
    $region12: #{projection_head.1} parent=5 // pred_fallthru
      _
    %p149 = scmp.lt.s32.totalorder %s10, 2
    // Predicated region
    $region25: #{projection_head.1} parent=5 // pred_check
      %p150 = pneg %p149
    $region26: #{projection_head.1} parent=5 // pred_check_branch
      %152 = sbr.rel (%p150) target = $region28
    $region27: #{projection_head.1} parent=5 // pred_region
      // Predicated region
      $region29: #{projection_head.1} parent=27 // pred_check
        %p153 = pneg %p30
      $region30: #{projection_head.1} parent=27 // pred_check_branch
        %155 = sbr.rel (%p153) target = $region32
      $region31: #{projection_head.1} parent=27 // pred_region
        %s156 = smul.u32 16, %s10
        %p157 = scmp.lt.s32.totalorder %s156, 31
        %s158 = scalar_select %p157, %s156, 31
        %s159 = smul.addr %s158, 8
        %s160 = scalar_lea.vmem %s0, %s159
        %s161 = smul.u32 16, %s10
      $region32: #{projection_head.1} parent=27 // pred_fallthru
        _
    $region28: #{projection_head.1} parent=5 // pred_fallthru
      _
    %p162 = scmp.le.s32.totalorder 1, %s10
    %p163 = scmp.lt.s32.totalorder %s10, 3
    %p164 = pnand %p162, %p163
    %p165 = pneg %p164
    // Predicated region
    $region33: #{projection_head.1} parent=5 // pred_check
      _
    $region34: #{projection_head.1} parent=5 // pred_check_branch
      %167 = sbr.rel (%p164) target = $region36
    $region35: #{projection_head.1} parent=5 // pred_region
      %s168 = ssub.s32 %s10, 1
      %s169 = smul.u32 16, %s15
      %p170 = scmp.lt.s32.totalorder %s169, 31
      %s171 = scalar_select %p170, %s169, 31
      %s172 = smul.addr %s171, 8
      %s173 = scalar_lea.vmem %s0, %s172
      %p174 = pneg %p36
      %p175 = pneg %p33
      %p176 = pneg %p57
      %p177 = pneg %p54
      %p178 = pneg %p78
      %p179 = pneg %p75
      %p180 = pneg %p99
      %p181 = pneg %p96
      %p182 = pneg %p125
      %p183 = pneg %p122
      %s184 = smul.u32 16, %s15
      %p185 = scmp.lt.s32.totalorder %s184, 31
      %s186 = scalar_select %p185, %s184, 31
      %s187 = smul.addr %s186, 2
      %s188 = smul.addr %s187, 8
      %s189 = scalar_lea.vmem %s4, %s188
      %s190 = smul.u32 16, %s15
      %p191 = scmp.lt.s32.totalorder %s190, 31
      %s192 = scalar_select %p191, %s190, 31
      %s193 = smul.addr %s192, 8
      %s194 = scalar_lea.vmem %s0, %s193
      %s195 = smul.u32 16, %s15
      %s196 = smul.u32 16, %s15
      %p197 = scmp.lt.s32.totalorder %s196, 31
      %s198 = scalar_select %p197, %s196, 31
      %s199 = smul.addr %s198, 2
      %s200 = smul.addr %s199, 8
      %s201 = scalar_lea.vmem %s4, %s200
      %s202 = smul.u32 16, %s15
      %v203 = vld [vmem:[%s3] sm:$0xff]
      %v204 = vld [vmem:[%s194] sm:$0xff]
      %v205 = vld [vmem:[%s194 + $0x8] sm:$0xff]
      %v206 = vld [vmem:[%s194 + $0x10] sm:$0xff]
      %v207 = vld [vmem:[%s194 + $0x18] sm:$0xff]
      %v208 = vld [vmem:[%s194 + $0x20] sm:$0xff]
      %v209 = vld [vmem:[%s194 + $0x28] sm:$0xff]
      %v210 = vld [vmem:[%s194 + $0x30] sm:$0xff]
      %v211 = vld [vmem:[%s194 + $0x38] sm:$0xff]
      %v212 = vld [vmem:[%s194 + $0x40] sm:$0xff]
      %v213 = vld [vmem:[%s194 + $0x48] sm:$0xff]
      %v214 = vld [vmem:[%s194 + $0x50] sm:$0xff]
      %v215 = vld [vmem:[%s194 + $0x58] sm:$0xff]
      %v216 = vld [vmem:[%s194 + $0x60] sm:$0xff]
      %v217 = vld [vmem:[%s194 + $0x68] sm:$0xff]
      %v218 = vld [vmem:[%s194 + $0x70] sm:$0xff]
      %v219 = vld [vmem:[%s194 + $0x78] sm:$0xff]
      %v220 = vld [vmem:[%s1] sm:$0xff]
      %v221 = vld [vmem:[%s1 + $0x8] sm:$0xff]
      %v222 = vld [vmem:[%s1 + $0x10] sm:$0xff]
      %v223 = vld [vmem:[%s1 + $0x18] sm:$0xff]
      %v224 = vld [vmem:[%s1 + $0x20] sm:$0xff]
      %v225 = vld [vmem:[%s1 + $0x28] sm:$0xff]
      %v226 = vld [vmem:[%s1 + $0x30] sm:$0xff]
      %v227 = vld [vmem:[%s1 + $0x38] sm:$0xff]
      %v229 = vlaneseq
      %v230 = vshrl.u32 %v229, 7
      %v231 = vsub.s32 0, %v230
      %v232 = vrot.slane %v203, %v231
      %v233 = vlaneseq
      %v234 = vshrl.u32 %v233, 7
      %v235 = vsub.s32 4, %v234
      %v236 = vrot.slane %v203, %v235
      %v239 = vlaneseq
      %v240 = vshrl.u32 %v239, 7
      %v241 = vsub.s32 0, %v240
      %v242 = vrot.slane %v232, %v241
      %v243 = vlaneseq
      %v244 = vshrl.u32 %v243, 7
      %v245 = vsub.s32 0, %v244
      %v246 = vrot.slane %v236, %v245
      %vm247 = vcmask 261120
      %v249 = vsel %vm247, %v204, 0
      %v252 = vsel %vm247, %v205, 0
      %v255 = vsel %vm247, %v206, 0
      %v258 = vsel %vm247, %v207, 0
      %v261 = vsel %vm247, %v208, 0
      %v264 = vsel %vm247, %v209, 0
      %v267 = vsel %vm247, %v210, 0
      %v270 = vsel %vm247, %v211, 0
      %v273 = vsel %vm247, %v212, 0
      %v276 = vsel %vm247, %v213, 0
      %v279 = vsel %vm247, %v214, 0
      %v282 = vsel %vm247, %v215, 0
      %v285 = vsel %vm247, %v216, 0
      %v288 = vsel %vm247, %v217, 0
      %v291 = vsel %vm247, %v218, 0
      %v294 = vsel %vm247, %v219, 0
      %296 = vmatprep.subr.mxu0 %v221
      %297 = vmatpush1.msra.mxu0 %v220
      %298 = vmatprep.subr.mxu0 %v223
      %299 = vmatpush1.msra.mxu0 %v222
      %300 = vmatprep.subr.mxu0 %v225
      %301 = vmatpush1.msra.mxu0 %v224
      %302 = vmatprep.subr.mxu0 %v227
      %303 = vmatpush1.msra.mxu0 %v226
      %304 = vmatprep.subr.mxu0 0.0
      %305 = vmatpush1.msra.mxu0 0.0
      %306 = vmatprep.subr.mxu0 0.0
      %307 = vmatpush1.msra.mxu0 0.0
      %308 = vmatprep.subr.mxu0 0.0
      %309 = vmatpush1.msra.mxu0 0.0
      %310 = vmatprep.subr.mxu0 0.0
      %311 = vmatpush1.msra.mxu0 0.0
      %312 = vmatprep.subr.mxu0 0.0
      %313 = vmatpush1.msra.mxu0 0.0
      %314 = vmatprep.subr.mxu0 0.0
      %315 = vmatpush1.msra.mxu0 0.0
      %316 = vmatprep.subr.mxu0 0.0
      %317 = vmatpush1.msra.mxu0 0.0
      %318 = vmatprep.subr.mxu0 0.0
      %319 = vmatpush1.msra.mxu0 0.0
      %320 = vmatprep.subr.mxu0 0.0
      %321 = vmatpush1.msra.mxu0 0.0
      %322 = vmatprep.subr.mxu0 0.0
      %323 = vmatpush1.msra.mxu0 0.0
      %324 = vmatprep.subr.mxu0 0.0
      %325 = vmatpush1.msra.mxu0 0.0
      %326 = vmatprep.subr.mxu0 0.0
      %327 = vmatpush1.msra.mxu0 0.0
      %328 = vmatprep.subr.mxu0 0.0
      %329 = vmatpush1.msra.mxu0 0.0
      %330 = vmatprep.subr.mxu0 0.0
      %331 = vmatpush1.msra.mxu0 0.0
      %332 = vmatprep.subr.mxu0 0.0
      %333 = vmatpush1.msra.mxu0 0.0
      %334 = vmatprep.subr.mxu0 0.0
      %335 = vmatpush1.msra.mxu0 0.0
      %336 = vmatprep.subr.mxu0 0.0
      %337 = vmatpush1.msra.mxu0 0.0
      %338 = vmatprep.subr.mxu0 0.0
      %339 = vmatpush1.msra.mxu0 0.0
      %340 = vmatprep.subr.mxu0 0.0
      %341 = vmatpush1.msra.mxu0 0.0
      %342 = vmatprep.subr.mxu0 0.0
      %343 = vmatpush1.msra.mxu0 0.0
      %344 = vmatprep.subr.mxu0 0.0
      %345 = vmatpush1.msra.mxu0 0.0
      %346 = vmatprep.subr.mxu0 0.0
      %347 = vmatpush1.msra.mxu0 0.0
      %348 = vmatprep.subr.mxu0 0.0
      %349 = vmatpush1.msra.mxu0 0.0
      %350 = vmatprep.subr.mxu0 0.0
      %351 = vmatpush1.msra.mxu0 0.0
      %352 = vmatprep.subr.mxu0 0.0
      %353 = vmatpush1.msra.mxu0 0.0
      %354 = vmatprep.subr.mxu0 0.0
      %355 = vmatpush1.msra.mxu0 0.0
      %356 = vmatprep.subr.mxu0 0.0
      %357 = vmatpush1.msra.mxu0 0.0
      %358 = vmatprep.subr.mxu0 0.0
      %359 = vmatpush1.msra.mxu0 0.0
      %360 = vmatprep.mubr.f32.mxu0 0.0
      %361 = vmatmul.mubr.f32.gmra.mrb[0].mxu0 %v249
      %v362 = vpop.f32.mrb[0].mxu0
      %v363 = vadd.f32 %v242, %v362
      %v364 = vpop.f32.mrb[0].mxu0
      %v365 = vadd.f32 %v246, %v364
      %366 = vmatprep.mubr.f32.mxu0 0.0
      %367 = vmatmul.mubr.f32.gmra.mrb[0].mxu0 %v252
      %v368 = vpop.f32.mrb[0].mxu0
      %v369 = vadd.f32 %v242, %v368
      %v370 = vpop.f32.mrb[0].mxu0
      %v371 = vadd.f32 %v246, %v370
      %372 = vmatprep.mubr.f32.mxu0 0.0
      %373 = vmatmul.mubr.f32.gmra.mrb[0].mxu0 %v255
      %v374 = vpop.f32.mrb[0].mxu0
      %v375 = vadd.f32 %v242, %v374
      %v376 = vpop.f32.mrb[0].mxu0
      %v377 = vadd.f32 %v246, %v376
      %378 = vmatprep.mubr.f32.mxu0 0.0
      %379 = vmatmul.mubr.f32.gmra.mrb[0].mxu0 %v258
      %v380 = vpop.f32.mrb[0].mxu0
      %v381 = vadd.f32 %v242, %v380
      %v382 = vpop.f32.mrb[0].mxu0
      %v383 = vadd.f32 %v246, %v382
      %384 = vmatprep.mubr.f32.mxu0 0.0
      %385 = vmatmul.mubr.f32.gmra.mrb[0].mxu0 %v261
      %v386 = vpop.f32.mrb[0].mxu0
      %v387 = vadd.f32 %v242, %v386
      %v388 = vpop.f32.mrb[0].mxu0
      %v389 = vadd.f32 %v246, %v388
      %390 = vmatprep.mubr.f32.mxu0 0.0
      %391 = vmatmul.mubr.f32.gmra.mrb[0].mxu0 %v264
      %v392 = vpop.f32.mrb[0].mxu0
      %v393 = vadd.f32 %v242, %v392
      %v394 = vpop.f32.mrb[0].mxu0
      %v395 = vadd.f32 %v246, %v394
      %396 = vmatprep.mubr.f32.mxu0 0.0
      %397 = vmatmul.mubr.f32.gmra.mrb[0].mxu0 %v267
      %v398 = vpop.f32.mrb[0].mxu0
      %v399 = vadd.f32 %v242, %v398
      %v400 = vpop.f32.mrb[0].mxu0
      %v401 = vadd.f32 %v246, %v400
      %402 = vmatprep.mubr.f32.mxu0 0.0
      %403 = vmatmul.mubr.f32.gmra.mrb[0].mxu0 %v270
      %v404 = vpop.f32.mrb[0].mxu0
      %v405 = vadd.f32 %v242, %v404
      %v406 = vpop.f32.mrb[0].mxu0
      %v407 = vadd.f32 %v246, %v406
      %408 = vmatprep.mubr.f32.mxu0 0.0
      %409 = vmatmul.mubr.f32.gmra.mrb[0].mxu0 %v273
      %v410 = vpop.f32.mrb[0].mxu0
      %v411 = vadd.f32 %v242, %v410
      %v412 = vpop.f32.mrb[0].mxu0
      %v413 = vadd.f32 %v246, %v412
      %414 = vmatprep.mubr.f32.mxu0 0.0
      %415 = vmatmul.mubr.f32.gmra.mrb[0].mxu0 %v276
      %v416 = vpop.f32.mrb[0].mxu0
      %v417 = vadd.f32 %v242, %v416
      %v418 = vpop.f32.mrb[0].mxu0
      %v419 = vadd.f32 %v246, %v418
      %420 = vmatprep.mubr.f32.mxu0 0.0
      %421 = vmatmul.mubr.f32.gmra.mrb[0].mxu0 %v279
      %v422 = vpop.f32.mrb[0].mxu0
      %v423 = vadd.f32 %v242, %v422
      %v424 = vpop.f32.mrb[0].mxu0
      %v425 = vadd.f32 %v246, %v424
      %426 = vmatprep.mubr.f32.mxu0 0.0
      %427 = vmatmul.mubr.f32.gmra.mrb[0].mxu0 %v282
      %v428 = vpop.f32.mrb[0].mxu0
      %v429 = vadd.f32 %v242, %v428
      %v430 = vpop.f32.mrb[0].mxu0
      %v431 = vadd.f32 %v246, %v430
      %432 = vmatprep.mubr.f32.mxu0 0.0
      %433 = vmatmul.mubr.f32.gmra.mrb[0].mxu0 %v285
      %v434 = vpop.f32.mrb[0].mxu0
      %v435 = vadd.f32 %v242, %v434
      %v436 = vpop.f32.mrb[0].mxu0
      %v437 = vadd.f32 %v246, %v436
      %438 = vmatprep.mubr.f32.mxu0 0.0
      %439 = vmatmul.mubr.f32.gmra.mrb[0].mxu0 %v288
      %v440 = vpop.f32.mrb[0].mxu0
      %v441 = vadd.f32 %v242, %v440
      %v442 = vpop.f32.mrb[0].mxu0
      %v443 = vadd.f32 %v246, %v442
      %444 = vmatprep.mubr.f32.mxu0 0.0
      %445 = vmatmul.mubr.f32.gmra.mrb[0].mxu0 %v291
      %v446 = vpop.f32.mrb[0].mxu0
      %v447 = vadd.f32 %v242, %v446
      %v448 = vpop.f32.mrb[0].mxu0
      %v449 = vadd.f32 %v246, %v448
      %450 = vmatprep.mubr.f32.mxu0 0.0
      %451 = vmatmul.mubr.f32.gmra.mrb[0].mxu0 %v294
      %v452 = vpop.f32.mrb[0].mxu0
      %v453 = vadd.f32 %v242, %v452
      %v454 = vpop.f32.mrb[0].mxu0
      %v455 = vadd.f32 %v246, %v454
      %456 = vdwg.mxu0
      %v457 = vmul.f32 %v363, 0.5
      %v458 = vmul.f32 %v365, 0.5
      %v459 = vmul.f32 %v369, 0.5
      %v460 = vmul.f32 %v371, 0.5
      %v461 = vmul.f32 %v375, 0.5
      %v462 = vmul.f32 %v377, 0.5
      %v463 = vmul.f32 %v381, 0.5
      %v464 = vmul.f32 %v383, 0.5
      %v465 = vmul.f32 %v387, 0.5
      %v466 = vmul.f32 %v389, 0.5
      %v467 = vmul.f32 %v393, 0.5
      %v468 = vmul.f32 %v395, 0.5
      %v469 = vmul.f32 %v399, 0.5
      %v470 = vmul.f32 %v401, 0.5
      %v471 = vmul.f32 %v405, 0.5
      %v472 = vmul.f32 %v407, 0.5
      %v473 = vmul.f32 %v411, 0.5
      %v474 = vmul.f32 %v413, 0.5
      %v475 = vmul.f32 %v417, 0.5
      %v476 = vmul.f32 %v419, 0.5
      %v477 = vmul.f32 %v423, 0.5
      %v478 = vmul.f32 %v425, 0.5
      %v479 = vmul.f32 %v429, 0.5
      %v480 = vmul.f32 %v431, 0.5
      %v481 = vmul.f32 %v435, 0.5
      %v482 = vmul.f32 %v437, 0.5
      %v483 = vmul.f32 %v441, 0.5
      %v484 = vmul.f32 %v443, 0.5
      %v485 = vmul.f32 %v447, 0.5
      %v486 = vmul.f32 %v449, 0.5
      %v487 = vmul.f32 %v453, 0.5
      %v488 = vmul.f32 %v455, 0.5
      %v489 = vmul.f32 %v363, 0.70710677
      %v490 = vmul.f32 %v365, 0.70710677
      %v491 = vmul.f32 %v369, 0.70710677
      %v492 = vmul.f32 %v371, 0.70710677
      %v493 = vmul.f32 %v375, 0.70710677
      %v494 = vmul.f32 %v377, 0.70710677
      %v495 = vmul.f32 %v381, 0.70710677
      %v496 = vmul.f32 %v383, 0.70710677
      %v497 = vmul.f32 %v387, 0.70710677
      %v498 = vmul.f32 %v389, 0.70710677
      %v499 = vmul.f32 %v393, 0.70710677
      %v500 = vmul.f32 %v395, 0.70710677
      %v501 = vmul.f32 %v399, 0.70710677
      %v502 = vmul.f32 %v401, 0.70710677
      %v503 = vmul.f32 %v405, 0.70710677
      %v504 = vmul.f32 %v407, 0.70710677
      %v505 = vmul.f32 %v411, 0.70710677
      %v506 = vmul.f32 %v413, 0.70710677
      %v507 = vmul.f32 %v417, 0.70710677
      %v508 = vmul.f32 %v419, 0.70710677
      %v509 = vmul.f32 %v423, 0.70710677
      %v510 = vmul.f32 %v425, 0.70710677
      %v511 = vmul.f32 %v429, 0.70710677
      %v512 = vmul.f32 %v431, 0.70710677
      %v513 = vmul.f32 %v435, 0.70710677
      %v514 = vmul.f32 %v437, 0.70710677
      %v515 = vmul.f32 %v441, 0.70710677
      %v516 = vmul.f32 %v443, 0.70710677
      %v517 = vmul.f32 %v447, 0.70710677
      %v518 = vmul.f32 %v449, 0.70710677
      %v519 = vmul.f32 %v453, 0.70710677
      %v520 = vmul.f32 %v455, 0.70710677
      %v521 = verf.f32.pop %v489
      %v522 = verf.f32.pop %v490
      %v523 = verf.f32.pop %v491
      %v524 = verf.f32.pop %v492
      %v525 = verf.f32.pop %v493
      %v526 = verf.f32.pop %v494
      %v527 = verf.f32.pop %v495
      %v528 = verf.f32.pop %v496
      %v529 = verf.f32.pop %v497
      %v530 = verf.f32.pop %v498
      %v531 = verf.f32.pop %v499
      %v532 = verf.f32.pop %v500
      %v533 = verf.f32.pop %v501
      %v534 = verf.f32.pop %v502
      %v535 = verf.f32.pop %v503
      %v536 = verf.f32.pop %v504
      %v537 = verf.f32.pop %v505
      %v538 = verf.f32.pop %v506
      %v539 = verf.f32.pop %v507
      %v540 = verf.f32.pop %v508
      %v541 = verf.f32.pop %v509
      %v542 = verf.f32.pop %v510
      %v543 = verf.f32.pop %v511
      %v544 = verf.f32.pop %v512
      %v545 = verf.f32.pop %v513
      %v546 = verf.f32.pop %v514
      %v547 = verf.f32.pop %v515
      %v548 = verf.f32.pop %v516
      %v549 = verf.f32.pop %v517
      %v550 = verf.f32.pop %v518
      %v551 = verf.f32.pop %v519
      %v552 = verf.f32.pop %v520
      %v553 = vadd.f32 %v521, 1.0
      %v554 = vadd.f32 %v522, 1.0
      %v555 = vadd.f32 %v523, 1.0
      %v556 = vadd.f32 %v524, 1.0
      %v557 = vadd.f32 %v525, 1.0
      %v558 = vadd.f32 %v526, 1.0
      %v559 = vadd.f32 %v527, 1.0
      %v560 = vadd.f32 %v528, 1.0
      %v561 = vadd.f32 %v529, 1.0
      %v562 = vadd.f32 %v530, 1.0
      %v563 = vadd.f32 %v531, 1.0
      %v564 = vadd.f32 %v532, 1.0
      %v565 = vadd.f32 %v533, 1.0
      %v566 = vadd.f32 %v534, 1.0
      %v567 = vadd.f32 %v535, 1.0
      %v568 = vadd.f32 %v536, 1.0
      %v569 = vadd.f32 %v537, 1.0
      %v570 = vadd.f32 %v538, 1.0
      %v571 = vadd.f32 %v539, 1.0
      %v572 = vadd.f32 %v540, 1.0
      %v573 = vadd.f32 %v541, 1.0
      %v574 = vadd.f32 %v542, 1.0
      %v575 = vadd.f32 %v543, 1.0
      %v576 = vadd.f32 %v544, 1.0
      %v577 = vadd.f32 %v545, 1.0
      %v578 = vadd.f32 %v546, 1.0
      %v579 = vadd.f32 %v547, 1.0
      %v580 = vadd.f32 %v548, 1.0
      %v581 = vadd.f32 %v549, 1.0
      %v582 = vadd.f32 %v550, 1.0
      %v583 = vadd.f32 %v551, 1.0
      %v584 = vadd.f32 %v552, 1.0
      %v585 = vmul.f32 %v457, %v553
      %v586 = vmul.f32 %v458, %v554
      %v587 = vmul.f32 %v459, %v555
      %v588 = vmul.f32 %v460, %v556
      %v589 = vmul.f32 %v461, %v557
      %v590 = vmul.f32 %v462, %v558
      %v591 = vmul.f32 %v463, %v559
      %v592 = vmul.f32 %v464, %v560
      %v593 = vmul.f32 %v465, %v561
      %v594 = vmul.f32 %v466, %v562
      %v595 = vmul.f32 %v467, %v563
      %v596 = vmul.f32 %v468, %v564
      %v597 = vmul.f32 %v469, %v565
      %v598 = vmul.f32 %v470, %v566
      %v599 = vmul.f32 %v471, %v567
      %v600 = vmul.f32 %v472, %v568
      %v601 = vmul.f32 %v473, %v569
      %v602 = vmul.f32 %v474, %v570
      %v603 = vmul.f32 %v475, %v571
      %v604 = vmul.f32 %v476, %v572
      %v605 = vmul.f32 %v477, %v573
      %v606 = vmul.f32 %v478, %v574
      %v607 = vmul.f32 %v479, %v575
      %v608 = vmul.f32 %v480, %v576
      %v609 = vmul.f32 %v481, %v577
      %v610 = vmul.f32 %v482, %v578
      %v611 = vmul.f32 %v483, %v579
      %v612 = vmul.f32 %v484, %v580
      %v613 = vmul.f32 %v485, %v581
      %v614 = vmul.f32 %v486, %v582
      %v615 = vmul.f32 %v487, %v583
      %v616 = vmul.f32 %v488, %v584
      %v617 = vld [vmem:[%s2] sm:$0xff]
      %v618 = vld [vmem:[%s2 + $0x8] sm:$0xff]
      %v619 = vld [vmem:[%s2 + $0x10] sm:$0xff]
      %v620 = vld [vmem:[%s2 + $0x18] sm:$0xff]
      %v621 = vld [vmem:[%s2 + $0x20] sm:$0xff]
      %v622 = vld [vmem:[%s2 + $0x28] sm:$0xff]
      %v623 = vld [vmem:[%s2 + $0x30] sm:$0xff]
      %v624 = vld [vmem:[%s2 + $0x38] sm:$0xff]
      %v625 = vld [vmem:[%s2 + $0x40] sm:$0xff]
      %v626 = vld [vmem:[%s2 + $0x48] sm:$0xff]
      %v627 = vld [vmem:[%s2 + $0x50] sm:$0xff]
      %v628 = vld [vmem:[%s2 + $0x58] sm:$0xff]
      %v629 = vld [vmem:[%s2 + $0x60] sm:$0xff]
      %v630 = vld [vmem:[%s2 + $0x68] sm:$0xff]
      %v631 = vld [vmem:[%s2 + $0x70] sm:$0xff]
      %v632 = vld [vmem:[%s2 + $0x78] sm:$0xff]
      %v633 = vld [vmem:[%s2 + $0x80] sm:$0xff]
      %v634 = vld [vmem:[%s2 + $0x88] sm:$0xff]
      %v635 = vld [vmem:[%s2 + $0x90] sm:$0xff]
      %v636 = vld [vmem:[%s2 + $0x98] sm:$0xff]
      %v637 = vld [vmem:[%s2 + $0xa0] sm:$0xff]
      %v638 = vld [vmem:[%s2 + $0xa8] sm:$0xff]
      %v639 = vld [vmem:[%s2 + $0xb0] sm:$0xff]
      %v640 = vld [vmem:[%s2 + $0xb8] sm:$0xff]
      %v641 = vld [vmem:[%s2 + $0xc0] sm:$0xff]
      %v642 = vld [vmem:[%s2 + $0xc8] sm:$0xff]
      %v643 = vld [vmem:[%s2 + $0xd0] sm:$0xff]
      %v644 = vld [vmem:[%s2 + $0xd8] sm:$0xff]
      %v645 = vld [vmem:[%s2 + $0xe0] sm:$0xff]
      %v646 = vld [vmem:[%s2 + $0xe8] sm:$0xff]
      %v647 = vld [vmem:[%s2 + $0xf0] sm:$0xff]
      %v648 = vld [vmem:[%s2 + $0xf8] sm:$0xff]
      %v649 = vld [vmem:[%s2 + $0x100] sm:$0xff]
      %v650 = vld [vmem:[%s2 + $0x108] sm:$0xff]
      %v651 = vld [vmem:[%s2 + $0x110] sm:$0xff]
      %v652 = vld [vmem:[%s2 + $0x118] sm:$0xff]
      %v653 = vld [vmem:[%s2 + $0x120] sm:$0xff]
      %v654 = vld [vmem:[%s2 + $0x128] sm:$0xff]
      %v655 = vld [vmem:[%s2 + $0x130] sm:$0xff]
      %v656 = vld [vmem:[%s2 + $0x138] sm:$0xff]
      %v657 = vld [vmem:[%s2 + $0x140] sm:$0xff]
      %v658 = vld [vmem:[%s2 + $0x148] sm:$0xff]
      %v659 = vld [vmem:[%s2 + $0x150] sm:$0xff]
      %v660 = vld [vmem:[%s2 + $0x158] sm:$0xff]
      %v661 = vld [vmem:[%s2 + $0x160] sm:$0xff]
      %v662 = vld [vmem:[%s2 + $0x168] sm:$0xff]
      %v663 = vld [vmem:[%s2 + $0x170] sm:$0xff]
      %v664 = vld [vmem:[%s2 + $0x178] sm:$0xff]
      %v665 = vld [vmem:[%s2 + $0x180] sm:$0xff]
      %v666 = vld [vmem:[%s2 + $0x188] sm:$0xff]
      %v667 = vld [vmem:[%s2 + $0x190] sm:$0xff]
      %v668 = vld [vmem:[%s2 + $0x198] sm:$0xff]
      %v669 = vld [vmem:[%s2 + $0x1a0] sm:$0xff]
      %v670 = vld [vmem:[%s2 + $0x1a8] sm:$0xff]
      %v671 = vld [vmem:[%s2 + $0x1b0] sm:$0xff]
      %v672 = vld [vmem:[%s2 + $0x1b8] sm:$0xff]
      %v673 = vld [vmem:[%s2 + $0x1c0] sm:$0xff]
      %v674 = vld [vmem:[%s2 + $0x1c8] sm:$0xff]
      %v675 = vld [vmem:[%s2 + $0x1d0] sm:$0xff]
      %v676 = vld [vmem:[%s2 + $0x1d8] sm:$0xff]
      %v677 = vld [vmem:[%s2 + $0x1e0] sm:$0xff]
      %v678 = vld [vmem:[%s2 + $0x1e8] sm:$0xff]
      %v679 = vld [vmem:[%s2 + $0x1f0] sm:$0xff]
      %v680 = vld [vmem:[%s2 + $0x1f8] sm:$0xff]
      %v681 = vlaneseq
      %v682 = vshrl.u32 %v681, 7
      %v683 = vsub.s32 1, %v682
      %v684 = vrot.slane %v203, %v683
      %v685 = vlaneseq
      %v686 = vshrl.u32 %v685, 7
      %v687 = vsub.s32 5, %v686
      %v688 = vrot.slane %v203, %v687
      %v691 = vlaneseq
      %v692 = vshrl.u32 %v691, 7
      %v693 = vsub.s32 1, %v692
      %v694 = vrot.slane %v684, %v693
      %v695 = vlaneseq
      %v696 = vshrl.u32 %v695, 7
      %v697 = vsub.s32 1, %v696
      %v698 = vrot.slane %v688, %v697
      %699 = vmatprep.subr.mxu0 %v618
      %700 = vmatpush1.msra.mxu0 %v617
      %701 = vmatprep.subr.mxu0 %v620
      %702 = vmatpush1.msra.mxu0 %v619
      %703 = vmatprep.subr.mxu0 %v622
      %704 = vmatpush1.msra.mxu0 %v621
      %705 = vmatprep.subr.mxu0 %v624
      %706 = vmatpush1.msra.mxu0 %v623
      %707 = vmatprep.subr.mxu0 %v626
      %708 = vmatpush1.msra.mxu0 %v625
      %709 = vmatprep.subr.mxu0 %v628
      %710 = vmatpush1.msra.mxu0 %v627
      %711 = vmatprep.subr.mxu0 %v630
      %712 = vmatpush1.msra.mxu0 %v629
      %713 = vmatprep.subr.mxu0 %v632
      %714 = vmatpush1.msra.mxu0 %v631
      %715 = vmatprep.subr.mxu0 %v634
      %716 = vmatpush1.msra.mxu0 %v633
      %717 = vmatprep.subr.mxu0 %v636
      %718 = vmatpush1.msra.mxu0 %v635
      %719 = vmatprep.subr.mxu0 %v638
      %720 = vmatpush1.msra.mxu0 %v637
      %721 = vmatprep.subr.mxu0 %v640
      %722 = vmatpush1.msra.mxu0 %v639
      %723 = vmatprep.subr.mxu0 %v642
      %724 = vmatpush1.msra.mxu0 %v641
      %725 = vmatprep.subr.mxu0 %v644
      %726 = vmatpush1.msra.mxu0 %v643
      %727 = vmatprep.subr.mxu0 %v646
      %728 = vmatpush1.msra.mxu0 %v645
      %729 = vmatprep.subr.mxu0 %v648
      %730 = vmatpush1.msra.mxu0 %v647
      %731 = vmatprep.subr.mxu0 %v650
      %732 = vmatpush1.msra.mxu0 %v649
      %733 = vmatprep.subr.mxu0 %v652
      %734 = vmatpush1.msra.mxu0 %v651
      %735 = vmatprep.subr.mxu0 %v654
      %736 = vmatpush1.msra.mxu0 %v653
      %737 = vmatprep.subr.mxu0 %v656
      %738 = vmatpush1.msra.mxu0 %v655
      %739 = vmatprep.subr.mxu0 %v658
      %740 = vmatpush1.msra.mxu0 %v657
      %741 = vmatprep.subr.mxu0 %v660
      %742 = vmatpush1.msra.mxu0 %v659
      %743 = vmatprep.subr.mxu0 %v662
      %744 = vmatpush1.msra.mxu0 %v661
      %745 = vmatprep.subr.mxu0 %v664
      %746 = vmatpush1.msra.mxu0 %v663
      %747 = vmatprep.subr.mxu0 %v666
      %748 = vmatpush1.msra.mxu0 %v665
      %749 = vmatprep.subr.mxu0 %v668
      %750 = vmatpush1.msra.mxu0 %v667
      %751 = vmatprep.subr.mxu0 %v670
      %752 = vmatpush1.msra.mxu0 %v669
      %753 = vmatprep.subr.mxu0 %v672
      %754 = vmatpush1.msra.mxu0 %v671
      %755 = vmatprep.subr.mxu0 %v674
      %756 = vmatpush1.msra.mxu0 %v673
      %757 = vmatprep.subr.mxu0 %v676
      %758 = vmatpush1.msra.mxu0 %v675
      %759 = vmatprep.subr.mxu0 %v678
      %760 = vmatpush1.msra.mxu0 %v677
      %761 = vmatprep.subr.mxu0 %v680
      %762 = vmatpush1.msra.mxu0 %v679
      %763 = vmatprep.mubr.f32.mxu0 %v586
      %764 = vmatmul.mubr.f32.gmra.mrb[0].mxu0 %v585
      %v765 = vpop.f32.mrb[0].mxu0
      %v766 = vadd.f32 %v694, %v765
      %v767 = vpop.f32.mrb[0].mxu0
      %v768 = vadd.f32 %v698, %v767
      %769 = vmatprep.mubr.f32.mxu0 %v588
      %770 = vmatmul.mubr.f32.gmra.mrb[0].mxu0 %v587
      %v771 = vpop.f32.mrb[0].mxu0
      %v772 = vadd.f32 %v694, %v771
      %v773 = vpop.f32.mrb[0].mxu0
      %v774 = vadd.f32 %v698, %v773
      %775 = vmatprep.mubr.f32.mxu0 %v590
      %776 = vmatmul.mubr.f32.gmra.mrb[0].mxu0 %v589
      %v777 = vpop.f32.mrb[0].mxu0
      %v778 = vadd.f32 %v694, %v777
      %v779 = vpop.f32.mrb[0].mxu0
      %v780 = vadd.f32 %v698, %v779
      %781 = vmatprep.mubr.f32.mxu0 %v592
      %782 = vmatmul.mubr.f32.gmra.mrb[0].mxu0 %v591
      %v783 = vpop.f32.mrb[0].mxu0
      %v784 = vadd.f32 %v694, %v783
      %v785 = vpop.f32.mrb[0].mxu0
      %v786 = vadd.f32 %v698, %v785
      %787 = vmatprep.mubr.f32.mxu0 %v594
      %788 = vmatmul.mubr.f32.gmra.mrb[0].mxu0 %v593
      %v789 = vpop.f32.mrb[0].mxu0
      %v790 = vadd.f32 %v694, %v789
      %v791 = vpop.f32.mrb[0].mxu0
      %v792 = vadd.f32 %v698, %v791
      %793 = vmatprep.mubr.f32.mxu0 %v596
      %794 = vmatmul.mubr.f32.gmra.mrb[0].mxu0 %v595
      %v795 = vpop.f32.mrb[0].mxu0
      %v796 = vadd.f32 %v694, %v795
      %v797 = vpop.f32.mrb[0].mxu0
      %v798 = vadd.f32 %v698, %v797
      %799 = vmatprep.mubr.f32.mxu0 %v598
      %800 = vmatmul.mubr.f32.gmra.mrb[0].mxu0 %v597
      %v801 = vpop.f32.mrb[0].mxu0
      %v802 = vadd.f32 %v694, %v801
      %v803 = vpop.f32.mrb[0].mxu0
      %v804 = vadd.f32 %v698, %v803
      %805 = vmatprep.mubr.f32.mxu0 %v600
      %806 = vmatmul.mubr.f32.gmra.mrb[0].mxu0 %v599
      %v807 = vpop.f32.mrb[0].mxu0
      %v808 = vadd.f32 %v694, %v807
      %v809 = vpop.f32.mrb[0].mxu0
      %v810 = vadd.f32 %v698, %v809
      %811 = vmatprep.mubr.f32.mxu0 %v602
      %812 = vmatmul.mubr.f32.gmra.mrb[0].mxu0 %v601
      %v813 = vpop.f32.mrb[0].mxu0
      %v814 = vadd.f32 %v694, %v813
      %v815 = vpop.f32.mrb[0].mxu0
      %v816 = vadd.f32 %v698, %v815
      %817 = vmatprep.mubr.f32.mxu0 %v604
      %818 = vmatmul.mubr.f32.gmra.mrb[0].mxu0 %v603
      %v819 = vpop.f32.mrb[0].mxu0
      %v820 = vadd.f32 %v694, %v819
      %v821 = vpop.f32.mrb[0].mxu0
      %v822 = vadd.f32 %v698, %v821
      %823 = vmatprep.mubr.f32.mxu0 %v606
      %824 = vmatmul.mubr.f32.gmra.mrb[0].mxu0 %v605
      %v825 = vpop.f32.mrb[0].mxu0
      %v826 = vadd.f32 %v694, %v825
      %v827 = vpop.f32.mrb[0].mxu0
      %v828 = vadd.f32 %v698, %v827
      %829 = vmatprep.mubr.f32.mxu0 %v608
      %830 = vmatmul.mubr.f32.gmra.mrb[0].mxu0 %v607
      %v831 = vpop.f32.mrb[0].mxu0
      %v832 = vadd.f32 %v694, %v831
      %v833 = vpop.f32.mrb[0].mxu0
      %v834 = vadd.f32 %v698, %v833
      %835 = vmatprep.mubr.f32.mxu0 %v610
      %836 = vmatmul.mubr.f32.gmra.mrb[0].mxu0 %v609
      %v837 = vpop.f32.mrb[0].mxu0
      %v838 = vadd.f32 %v694, %v837
      %v839 = vpop.f32.mrb[0].mxu0
      %v840 = vadd.f32 %v698, %v839
      %841 = vmatprep.mubr.f32.mxu0 %v612
      %842 = vmatmul.mubr.f32.gmra.mrb[0].mxu0 %v611
      %v843 = vpop.f32.mrb[0].mxu0
      %v844 = vadd.f32 %v694, %v843
      %v845 = vpop.f32.mrb[0].mxu0
      %v846 = vadd.f32 %v698, %v845
      %847 = vmatprep.mubr.f32.mxu0 %v614
      %848 = vmatmul.mubr.f32.gmra.mrb[0].mxu0 %v613
      %v849 = vpop.f32.mrb[0].mxu0
      %v850 = vadd.f32 %v694, %v849
      %v851 = vpop.f32.mrb[0].mxu0
      %v852 = vadd.f32 %v698, %v851
      %853 = vmatprep.mubr.f32.mxu0 %v616
      %854 = vmatmul.mubr.f32.gmra.mrb[0].mxu0 %v615
      %v855 = vpop.f32.mrb[0].mxu0
      %v856 = vadd.f32 %v694, %v855
      %v857 = vpop.f32.mrb[0].mxu0
      %v858 = vadd.f32 %v698, %v857
      %859 = vdwg.mxu0
      %v860 = vadd.f32 %v766, %v363
      %v861 = vadd.f32 %v768, %v365
      %v862 = vadd.f32 %v772, %v369
      %v863 = vadd.f32 %v774, %v371
      %v864 = vadd.f32 %v778, %v375
      %v865 = vadd.f32 %v780, %v377
      %v866 = vadd.f32 %v784, %v381
      %v867 = vadd.f32 %v786, %v383
      %v868 = vadd.f32 %v790, %v387
      %v869 = vadd.f32 %v792, %v389
      %v870 = vadd.f32 %v796, %v393
      %v871 = vadd.f32 %v798, %v395
      %v872 = vadd.f32 %v802, %v399
      %v873 = vadd.f32 %v804, %v401
      %v874 = vadd.f32 %v808, %v405
      %v875 = vadd.f32 %v810, %v407
      %v876 = vadd.f32 %v814, %v411
      %v877 = vadd.f32 %v816, %v413
      %v878 = vadd.f32 %v820, %v417
      %v879 = vadd.f32 %v822, %v419
      %v880 = vadd.f32 %v826, %v423
      %v881 = vadd.f32 %v828, %v425
      %v882 = vadd.f32 %v832, %v429
      %v883 = vadd.f32 %v834, %v431
      %v884 = vadd.f32 %v838, %v435
      %v885 = vadd.f32 %v840, %v437
      %v886 = vadd.f32 %v844, %v441
      %v887 = vadd.f32 %v846, %v443
      %v888 = vadd.f32 %v850, %v447
      %v889 = vadd.f32 %v852, %v449
      %v890 = vadd.f32 %v856, %v453
      %v891 = vadd.f32 %v858, %v455
      %v892 = vadd.f32 %v860, %v861
      %893 = vadd.xlane.f32.xlu0 %v892
      %v894 = vpop.xlane.xlu0 %893
      %v895 = vadd.f32 %v862, %v863
      %896 = vadd.xlane.f32.xlu0 %v895
      %v897 = vpop.xlane.xlu0 %896
      %v898 = vadd.f32 %v864, %v865
      %899 = vadd.xlane.f32.xlu0 %v898
      %v900 = vpop.xlane.xlu0 %899
      %v901 = vadd.f32 %v866, %v867
      %902 = vadd.xlane.f32.xlu0 %v901
      %v903 = vpop.xlane.xlu0 %902
      %v904 = vadd.f32 %v868, %v869
      %905 = vadd.xlane.f32.xlu0 %v904
      %v906 = vpop.xlane.xlu0 %905
      %v907 = vadd.f32 %v870, %v871
      %908 = vadd.xlane.f32.xlu0 %v907
      %v909 = vpop.xlane.xlu0 %908
      %v910 = vadd.f32 %v872, %v873
      %911 = vadd.xlane.f32.xlu0 %v910
      %v912 = vpop.xlane.xlu0 %911
      %v913 = vadd.f32 %v874, %v875
      %914 = vadd.xlane.f32.xlu0 %v913
      %v915 = vpop.xlane.xlu0 %914
      %v916 = vadd.f32 %v876, %v877
      %917 = vadd.xlane.f32.xlu0 %v916
      %v918 = vpop.xlane.xlu0 %917
      %v919 = vadd.f32 %v878, %v879
      %920 = vadd.xlane.f32.xlu0 %v919
      %v921 = vpop.xlane.xlu0 %920
      %v922 = vadd.f32 %v880, %v881
      %923 = vadd.xlane.f32.xlu0 %v922
      %v924 = vpop.xlane.xlu0 %923
      %v925 = vadd.f32 %v882, %v883
      %926 = vadd.xlane.f32.xlu0 %v925
      %v927 = vpop.xlane.xlu0 %926
      %v928 = vadd.f32 %v884, %v885
      %929 = vadd.xlane.f32.xlu0 %v928
      %v930 = vpop.xlane.xlu0 %929
      %v931 = vadd.f32 %v886, %v887
      %932 = vadd.xlane.f32.xlu0 %v931
      %v933 = vpop.xlane.xlu0 %932
      %v934 = vadd.f32 %v888, %v889
      %935 = vadd.xlane.f32.xlu0 %v934
      %v936 = vpop.xlane.xlu0 %935
      %v937 = vadd.f32 %v890, %v891
      %938 = vadd.xlane.f32.xlu0 %v937
      %v939 = vpop.xlane.xlu0 %938
      %v940 = vrcp.pop 256.0
      %v941 = vmul.f32 %v894, %v940
      %v942 = vmul.f32 %v897, %v940
      %v943 = vmul.f32 %v900, %v940
      %v944 = vmul.f32 %v903, %v940
      %v945 = vmul.f32 %v906, %v940
      %v946 = vmul.f32 %v909, %v940
      %v947 = vmul.f32 %v912, %v940
      %v948 = vmul.f32 %v915, %v940
      %v949 = vmul.f32 %v918, %v940
      %v950 = vmul.f32 %v921, %v940
      %v951 = vmul.f32 %v924, %v940
      %v952 = vmul.f32 %v927, %v940
      %v953 = vmul.f32 %v930, %v940
      %v954 = vmul.f32 %v933, %v940
      %v955 = vmul.f32 %v936, %v940
      %v956 = vmul.f32 %v939, %v940
      %v957 = vsub.f32 %v860, %v941
      %v958 = vsub.f32 %v861, %v941
      %v959 = vsub.f32 %v862, %v942
      %v960 = vsub.f32 %v863, %v942
      %v961 = vsub.f32 %v864, %v943
      %v962 = vsub.f32 %v865, %v943
      %v963 = vsub.f32 %v866, %v944
      %v964 = vsub.f32 %v867, %v944
      %v965 = vsub.f32 %v868, %v945
      %v966 = vsub.f32 %v869, %v945
      %v967 = vsub.f32 %v870, %v946
      %v968 = vsub.f32 %v871, %v946
      %v969 = vsub.f32 %v872, %v947
      %v970 = vsub.f32 %v873, %v947
      %v971 = vsub.f32 %v874, %v948
      %v972 = vsub.f32 %v875, %v948
      %v973 = vsub.f32 %v876, %v949
      %v974 = vsub.f32 %v877, %v949
      %v975 = vsub.f32 %v878, %v950
      %v976 = vsub.f32 %v879, %v950
      %v977 = vsub.f32 %v880, %v951
      %v978 = vsub.f32 %v881, %v951
      %v979 = vsub.f32 %v882, %v952
      %v980 = vsub.f32 %v883, %v952
      %v981 = vsub.f32 %v884, %v953
      %v982 = vsub.f32 %v885, %v953
      %v983 = vsub.f32 %v886, %v954
      %v984 = vsub.f32 %v887, %v954
      %v985 = vsub.f32 %v888, %v955
      %v986 = vsub.f32 %v889, %v955
      %v987 = vsub.f32 %v890, %v956
      %v988 = vsub.f32 %v891, %v956
      %v989 = vmul.f32 %v957, %v957
      %v990 = vmul.f32 %v958, %v958
      %v991 = vmul.f32 %v959, %v959
      %v992 = vmul.f32 %v960, %v960
      %v993 = vmul.f32 %v961, %v961
      %v994 = vmul.f32 %v962, %v962
      %v995 = vmul.f32 %v963, %v963
      %v996 = vmul.f32 %v964, %v964
      %v997 = vmul.f32 %v965, %v965
      %v998 = vmul.f32 %v966, %v966
      %v999 = vmul.f32 %v967, %v967
      %v1000 = vmul.f32 %v968, %v968
      %v1001 = vmul.f32 %v969, %v969
      %v1002 = vmul.f32 %v970, %v970
      %v1003 = vmul.f32 %v971, %v971
      %v1004 = vmul.f32 %v972, %v972
      %v1005 = vmul.f32 %v973, %v973
      %v1006 = vmul.f32 %v974, %v974
      %v1007 = vmul.f32 %v975, %v975
      %v1008 = vmul.f32 %v976, %v976
      %v1009 = vmul.f32 %v977, %v977
      %v1010 = vmul.f32 %v978, %v978
      %v1011 = vmul.f32 %v979, %v979
      %v1012 = vmul.f32 %v980, %v980
      %v1013 = vmul.f32 %v981, %v981
      %v1014 = vmul.f32 %v982, %v982
      %v1015 = vmul.f32 %v983, %v983
      %v1016 = vmul.f32 %v984, %v984
      %v1017 = vmul.f32 %v985, %v985
      %v1018 = vmul.f32 %v986, %v986
      %v1019 = vmul.f32 %v987, %v987
      %v1020 = vmul.f32 %v988, %v988
      %v1021 = vadd.f32 %v989, %v990
      %1022 = vadd.xlane.f32.xlu0 %v1021
      %v1023 = vpop.xlane.xlu0 %1022
      %v1024 = vadd.f32 %v991, %v992
      %1025 = vadd.xlane.f32.xlu0 %v1024
      %v1026 = vpop.xlane.xlu0 %1025
      %v1027 = vadd.f32 %v993, %v994
      %1028 = vadd.xlane.f32.xlu0 %v1027
      %v1029 = vpop.xlane.xlu0 %1028
      %v1030 = vadd.f32 %v995, %v996
      %1031 = vadd.xlane.f32.xlu0 %v1030
      %v1032 = vpop.xlane.xlu0 %1031
      %v1033 = vadd.f32 %v997, %v998
      %1034 = vadd.xlane.f32.xlu0 %v1033
      %v1035 = vpop.xlane.xlu0 %1034
      %v1036 = vadd.f32 %v999, %v1000
      %1037 = vadd.xlane.f32.xlu0 %v1036
      %v1038 = vpop.xlane.xlu0 %1037
      %v1039 = vadd.f32 %v1001, %v1002
      %1040 = vadd.xlane.f32.xlu0 %v1039
      %v1041 = vpop.xlane.xlu0 %1040
      %v1042 = vadd.f32 %v1003, %v1004
      %1043 = vadd.xlane.f32.xlu0 %v1042
      %v1044 = vpop.xlane.xlu0 %1043
      %v1045 = vadd.f32 %v1005, %v1006
      %1046 = vadd.xlane.f32.xlu0 %v1045
      %v1047 = vpop.xlane.xlu0 %1046
      %v1048 = vadd.f32 %v1007, %v1008
      %1049 = vadd.xlane.f32.xlu0 %v1048
      %v1050 = vpop.xlane.xlu0 %1049
      %v1051 = vadd.f32 %v1009, %v1010
      %1052 = vadd.xlane.f32.xlu0 %v1051
      %v1053 = vpop.xlane.xlu0 %1052
      %v1054 = vadd.f32 %v1011, %v1012
      %1055 = vadd.xlane.f32.xlu0 %v1054
      %v1056 = vpop.xlane.xlu0 %1055
      %v1057 = vadd.f32 %v1013, %v1014
      %1058 = vadd.xlane.f32.xlu0 %v1057
      %v1059 = vpop.xlane.xlu0 %1058
      %v1060 = vadd.f32 %v1015, %v1016
      %1061 = vadd.xlane.f32.xlu0 %v1060
      %v1062 = vpop.xlane.xlu0 %1061
      %v1063 = vadd.f32 %v1017, %v1018
      %1064 = vadd.xlane.f32.xlu0 %v1063
      %v1065 = vpop.xlane.xlu0 %1064
      %v1066 = vadd.f32 %v1019, %v1020
      %1067 = vadd.xlane.f32.xlu0 %v1066
      %v1068 = vpop.xlane.xlu0 %1067
      %v1069 = vmul.f32 %v1023, %v940
      %v1070 = vmul.f32 %v1026, %v940
      %v1071 = vmul.f32 %v1029, %v940
      %v1072 = vmul.f32 %v1032, %v940
      %v1073 = vmul.f32 %v1035, %v940
      %v1074 = vmul.f32 %v1038, %v940
      %v1075 = vmul.f32 %v1041, %v940
      %v1076 = vmul.f32 %v1044, %v940
      %v1077 = vmul.f32 %v1047, %v940
      %v1078 = vmul.f32 %v1050, %v940
      %v1079 = vmul.f32 %v1053, %v940
      %v1080 = vmul.f32 %v1056, %v940
      %v1081 = vmul.f32 %v1059, %v940
      %v1082 = vmul.f32 %v1062, %v940
      %v1083 = vmul.f32 %v1065, %v940
      %v1084 = vmul.f32 %v1068, %v940
      %v1085 = vadd.f32 %v1069, 1e-05
      %v1086 = vadd.f32 %v1070, 1e-05
      %v1087 = vadd.f32 %v1071, 1e-05
      %v1088 = vadd.f32 %v1072, 1e-05
      %v1089 = vadd.f32 %v1073, 1e-05
      %v1090 = vadd.f32 %v1074, 1e-05
      %v1091 = vadd.f32 %v1075, 1e-05
      %v1092 = vadd.f32 %v1076, 1e-05
      %v1093 = vadd.f32 %v1077, 1e-05
      %v1094 = vadd.f32 %v1078, 1e-05
      %v1095 = vadd.f32 %v1079, 1e-05
      %v1096 = vadd.f32 %v1080, 1e-05
      %v1097 = vadd.f32 %v1081, 1e-05
      %v1098 = vadd.f32 %v1082, 1e-05
      %v1099 = vadd.f32 %v1083, 1e-05
      %v1100 = vadd.f32 %v1084, 1e-05
      %v1101 = vrsqrt.pop %v1085
      %v1102 = vrsqrt.pop %v1086
      %v1103 = vrsqrt.pop %v1087
      %v1104 = vrsqrt.pop %v1088
      %v1105 = vrsqrt.pop %v1089
      %v1106 = vrsqrt.pop %v1090
      %v1107 = vrsqrt.pop %v1091
      %v1108 = vrsqrt.pop %v1092
      %v1109 = vrsqrt.pop %v1093
      %v1110 = vrsqrt.pop %v1094
      %v1111 = vrsqrt.pop %v1095
      %v1112 = vrsqrt.pop %v1096
      %v1113 = vrsqrt.pop %v1097
      %v1114 = vrsqrt.pop %v1098
      %v1115 = vrsqrt.pop %v1099
      %v1116 = vrsqrt.pop %v1100
      %v1117 = vmul.f32 %v957, %v1101
      %v1118 = vmul.f32 %v958, %v1101
      %v1119 = vmul.f32 %v959, %v1102
      %v1120 = vmul.f32 %v960, %v1102
      %v1121 = vmul.f32 %v961, %v1103
      %v1122 = vmul.f32 %v962, %v1103
      %v1123 = vmul.f32 %v963, %v1104
      %v1124 = vmul.f32 %v964, %v1104
      %v1125 = vmul.f32 %v965, %v1105
      %v1126 = vmul.f32 %v966, %v1105
      %v1127 = vmul.f32 %v967, %v1106
      %v1128 = vmul.f32 %v968, %v1106
      %v1129 = vmul.f32 %v969, %v1107
      %v1130 = vmul.f32 %v970, %v1107
      %v1131 = vmul.f32 %v971, %v1108
      %v1132 = vmul.f32 %v972, %v1108
      %v1133 = vmul.f32 %v973, %v1109
      %v1134 = vmul.f32 %v974, %v1109
      %v1135 = vmul.f32 %v975, %v1110
      %v1136 = vmul.f32 %v976, %v1110
      %v1137 = vmul.f32 %v977, %v1111
      %v1138 = vmul.f32 %v978, %v1111
      %v1139 = vmul.f32 %v979, %v1112
      %v1140 = vmul.f32 %v980, %v1112
      %v1141 = vmul.f32 %v981, %v1113
      %v1142 = vmul.f32 %v982, %v1113
      %v1143 = vmul.f32 %v983, %v1114
      %v1144 = vmul.f32 %v984, %v1114
      %v1145 = vmul.f32 %v985, %v1115
      %v1146 = vmul.f32 %v986, %v1115
      %v1147 = vmul.f32 %v987, %v1116
      %v1148 = vmul.f32 %v988, %v1116
      %v1149 = vlaneseq
      %v1150 = vshrl.u32 %v1149, 7
      %v1151 = vsub.s32 2, %v1150
      %v1152 = vrot.slane %v203, %v1151
      %v1153 = vlaneseq
      %v1154 = vshrl.u32 %v1153, 7
      %v1155 = vsub.s32 6, %v1154
      %v1156 = vrot.slane %v203, %v1155
      %v1159 = vlaneseq
      %v1160 = vshrl.u32 %v1159, 7
      %v1161 = vsub.s32 2, %v1160
      %v1162 = vrot.slane %v1152, %v1161
      %v1163 = vlaneseq
      %v1164 = vshrl.u32 %v1163, 7
      %v1165 = vsub.s32 2, %v1164
      %v1166 = vrot.slane %v1156, %v1165
      %v1167 = vmul.f32 %v1117, %v1162
      %v1168 = vmul.f32 %v1118, %v1166
      %v1169 = vmul.f32 %v1119, %v1162
      %v1170 = vmul.f32 %v1120, %v1166
      %v1171 = vmul.f32 %v1121, %v1162
      %v1172 = vmul.f32 %v1122, %v1166
      %v1173 = vmul.f32 %v1123, %v1162
      %v1174 = vmul.f32 %v1124, %v1166
      %v1175 = vmul.f32 %v1125, %v1162
      %v1176 = vmul.f32 %v1126, %v1166
      %v1177 = vmul.f32 %v1127, %v1162
      %v1178 = vmul.f32 %v1128, %v1166
      %v1179 = vmul.f32 %v1129, %v1162
      %v1180 = vmul.f32 %v1130, %v1166
      %v1181 = vmul.f32 %v1131, %v1162
      %v1182 = vmul.f32 %v1132, %v1166
      %v1183 = vmul.f32 %v1133, %v1162
      %v1184 = vmul.f32 %v1134, %v1166
      %v1185 = vmul.f32 %v1135, %v1162
      %v1186 = vmul.f32 %v1136, %v1166
      %v1187 = vmul.f32 %v1137, %v1162
      %v1188 = vmul.f32 %v1138, %v1166
      %v1189 = vmul.f32 %v1139, %v1162
      %v1190 = vmul.f32 %v1140, %v1166
      %v1191 = vmul.f32 %v1141, %v1162
      %v1192 = vmul.f32 %v1142, %v1166
      %v1193 = vmul.f32 %v1143, %v1162
      %v1194 = vmul.f32 %v1144, %v1166
      %v1195 = vmul.f32 %v1145, %v1162
      %v1196 = vmul.f32 %v1146, %v1166
      %v1197 = vmul.f32 %v1147, %v1162
      %v1198 = vmul.f32 %v1148, %v1166
      %v1199 = vlaneseq
      %v1200 = vshrl.u32 %v1199, 7
      %v1201 = vsub.s32 3, %v1200
      %v1202 = vrot.slane %v203, %v1201
      %v1203 = vlaneseq
      %v1204 = vshrl.u32 %v1203, 7
      %v1205 = vsub.s32 7, %v1204
      %v1206 = vrot.slane %v203, %v1205
      %v1209 = vlaneseq
      %v1210 = vshrl.u32 %v1209, 7
      %v1211 = vsub.s32 3, %v1210
      %v1212 = vrot.slane %v1202, %v1211
      %v1213 = vlaneseq
      %v1214 = vshrl.u32 %v1213, 7
      %v1215 = vsub.s32 3, %v1214
      %v1216 = vrot.slane %v1206, %v1215
      %v1217 = vadd.f32 %v1167, %v1212
      %v1218 = vadd.f32 %v1168, %v1216
      %v1219 = vadd.f32 %v1169, %v1212
      %v1220 = vadd.f32 %v1170, %v1216
      %v1221 = vadd.f32 %v1171, %v1212
      %v1222 = vadd.f32 %v1172, %v1216
      %v1223 = vadd.f32 %v1173, %v1212
      %v1224 = vadd.f32 %v1174, %v1216
      %v1225 = vadd.f32 %v1175, %v1212
      %v1226 = vadd.f32 %v1176, %v1216
      %v1227 = vadd.f32 %v1177, %v1212
      %v1228 = vadd.f32 %v1178, %v1216
      %v1229 = vadd.f32 %v1179, %v1212
      %v1230 = vadd.f32 %v1180, %v1216
      %v1231 = vadd.f32 %v1181, %v1212
      %v1232 = vadd.f32 %v1182, %v1216
      %v1233 = vadd.f32 %v1183, %v1212
      %v1234 = vadd.f32 %v1184, %v1216
      %v1235 = vadd.f32 %v1185, %v1212
      %v1236 = vadd.f32 %v1186, %v1216
      %v1237 = vadd.f32 %v1187, %v1212
      %v1238 = vadd.f32 %v1188, %v1216
      %v1239 = vadd.f32 %v1189, %v1212
      %v1240 = vadd.f32 %v1190, %v1216
      %v1241 = vadd.f32 %v1191, %v1212
      %v1242 = vadd.f32 %v1192, %v1216
      %v1243 = vadd.f32 %v1193, %v1212
      %v1244 = vadd.f32 %v1194, %v1216
      %v1245 = vadd.f32 %v1195, %v1212
      %v1246 = vadd.f32 %v1196, %v1216
      %v1247 = vadd.f32 %v1197, %v1212
      %v1248 = vadd.f32 %v1198, %v1216
      %1249 = vst [vmem:[%s201] sm:$0xff] %v1217
      %1250 = vst [vmem:[%s201 + $0x8] sm:$0xff] %v1218
      %1251 = vst [vmem:[%s201 + $0x10] sm:$0xff] %v1219
      %1252 = vst [vmem:[%s201 + $0x18] sm:$0xff] %v1220
      %1253 = vst [vmem:[%s201 + $0x20] sm:$0xff] %v1221
      %1254 = vst [vmem:[%s201 + $0x28] sm:$0xff] %v1222
      %1255 = vst [vmem:[%s201 + $0x30] sm:$0xff] %v1223
      %1256 = vst [vmem:[%s201 + $0x38] sm:$0xff] %v1224
      %1257 = vst [vmem:[%s201 + $0x40] sm:$0xff] %v1225
      %1258 = vst [vmem:[%s201 + $0x48] sm:$0xff] %v1226
      %1259 = vst [vmem:[%s201 + $0x50] sm:$0xff] %v1227
      %1260 = vst [vmem:[%s201 + $0x58] sm:$0xff] %v1228
      %1261 = vst [vmem:[%s201 + $0x60] sm:$0xff] %v1229
      %1262 = vst [vmem:[%s201 + $0x68] sm:$0xff] %v1230
      %1263 = vst [vmem:[%s201 + $0x70] sm:$0xff] %v1231
      %1264 = vst [vmem:[%s201 + $0x78] sm:$0xff] %v1232
      %1265 = vst [vmem:[%s201 + $0x80] sm:$0xff] %v1233
      %1266 = vst [vmem:[%s201 + $0x88] sm:$0xff] %v1234
      %1267 = vst [vmem:[%s201 + $0x90] sm:$0xff] %v1235
      %1268 = vst [vmem:[%s201 + $0x98] sm:$0xff] %v1236
      %1269 = vst [vmem:[%s201 + $0xa0] sm:$0xff] %v1237
      %1270 = vst [vmem:[%s201 + $0xa8] sm:$0xff] %v1238
      %1271 = vst [vmem:[%s201 + $0xb0] sm:$0xff] %v1239
      %1272 = vst [vmem:[%s201 + $0xb8] sm:$0xff] %v1240
      %1273 = vst [vmem:[%s201 + $0xc0] sm:$0xff] %v1241
      %1274 = vst [vmem:[%s201 + $0xc8] sm:$0xff] %v1242
      %1275 = vst [vmem:[%s201 + $0xd0] sm:$0xff] %v1243
      %1276 = vst [vmem:[%s201 + $0xd8] sm:$0xff] %v1244
      %1277 = vst [vmem:[%s201 + $0xe0] sm:$0xff] %v1245
      %1278 = vst [vmem:[%s201 + $0xe8] sm:$0xff] %v1246
      %1279 = vst [vmem:[%s201 + $0xf0] sm:$0xff] %v1247
      %1280 = vst [vmem:[%s201 + $0xf8] sm:$0xff] %v1248
      %s1281 = smul.u32 16, %s15
      %p1282 = scmp.lt.s32.totalorder %s1281, 31
      %s1283 = scalar_select %p1282, %s1281, 31
      %s1284 = smul.addr %s1283, 2
      %s1285 = smul.addr %s1284, 8
      %s1286 = scalar_lea.vmem %s4, %s1285
      // Predicated region
      $region37: #{projection_head.1} parent=35 // pred_check
        %p1287 = pneg %p122
      $region38: #{projection_head.1} parent=35 // pred_check_branch
        %1289 = sbr.rel (%p1287) target = $region40
      $region39: #{projection_head.1} parent=35 // pred_region
        %s1290 = smul.u32 16, %s15
      $region40: #{projection_head.1} parent=35 // pred_fallthru
        _
    $region36: #{projection_head.1} parent=5 // pred_fallthru
      _
    %p1291 = scmp.le.s32.totalorder 2, %s10
    // Predicated region
    $region41: #{projection_head.1} parent=5 // pred_check
      %p1292 = pneg %p1291
    $region42: #{projection_head.1} parent=5 // pred_check_branch
      %1294 = sbr.rel (%p1292) target = $region44
    $region43: #{projection_head.1} parent=5 // pred_region
      %s1295 = ssub.s32 %s10, 2
      // Predicated region
      $region45: #{projection_head.1} parent=43 // pred_check
        %p1296 = pneg %p128
      $region46: #{projection_head.1} parent=43 // pred_check_branch
        %1298 = sbr.rel (%p1296) target = $region48
      $region47: #{projection_head.1} parent=43 // pred_region
        %s1299 = smul.u32 16, %s16
        %p1300 = scmp.lt.s32.totalorder %s1299, 31
        %s1301 = scalar_select %p1300, %s1299, 31
        %s1302 = smul.addr %s1301, 2
        %s1303 = smul.addr %s1302, 8
        %s1304 = scalar_lea.vmem %s4, %s1303
      $region48: #{projection_head.1} parent=43 // pred_fallthru
        _
    $region44: #{projection_head.1} parent=5 // pred_fallthru
      _
  $region6: #{projection_head.1} parent=0 // loop_footer
    %s14 = sadd.s32 1, %s10
  $region7: #{projection_head.1} parent=0 // loop_footer_branch
    %9 = sbr.rel target = $region3
  $region8: #{projection_head.1} parent=0 // loop_exit
    _

</llo_original>
